<compile_context>
chip_gen: v6e
topology: v6e:2x2x1
jax: 0.10.0
libtpu: 0.0.40
codegen_flags: <defaults>
</compile_context>

<pallas_src>
import jax
import jax.numpy as jnp
from jax.experimental import pallas as pl
from jax.experimental.pallas import tpu as pltpu


def fcnn_kernel(x_ref, w1_ref, b1_ref, w2_ref, b2_ref, w3_ref, b3_ref, o_ref):
    # x_ref: (10, tb) bf16 (DMA'd as bf16, computed in f32)
    # w*_ref: (out, in) f32, b*_ref: (out, 1) f32, o_ref: (2, tb) f32
    x = x_ref[...].astype(jnp.float32)
    h1 = jnp.dot(w1_ref[...], x, preferred_element_type=jnp.float32) + b1_ref[...]
    h1 = jnp.maximum(h1, 0.0)
    h2 = jnp.dot(w2_ref[...], h1, preferred_element_type=jnp.float32) + b2_ref[...]
    h2 = jnp.maximum(h2, 0.0)
    o_ref[...] = jnp.dot(w3_ref[...], h2, preferred_element_type=jnp.float32) + b3_ref[...]


def fcnn_forward(x, params, *, tile_b=16384):
    """x: [B, 10] float32.  params: dict of (W, b) per layer, W as [in, out], b as [1, out]."""
    w1, b1 = params["fc1"]
    w2, b2 = params["fc2"]
    w3, b3 = params["fc3"]

    B, in_dim = x.shape
    out_dim = w3.shape[1]

    # Feature-major (lane-dense) activations: last dim = batch.
    x_fm = x.T  # (10, B)

    if B > tile_b:
        tb = tile_b                              # multiple of 128 -> satisfies lane rule
        Bp = pl.cdiv(B, tb) * tb
        x_fm = jnp.pad(x_fm, ((0, 0), (0, Bp - B)))  # pad tail tile; sliced off below
    else:
        tb, Bp = B, B                            # single tile equal to full array dims

    x_fm = x_fm.astype(jnp.bfloat16)             # halve the dominant (batch-scaling) DMA

    # Weights as (out, in) f32; biases as (out, 1) f32 (broadcast over lanes).
    w1t, w2t, w3t = w1.T, w2.T, w3.T
    b1c, b2c, b3c = b1.T, b2.T, b3.T

    grid = (Bp // tb,)
    resident = lambda shape: pl.BlockSpec(shape, lambda i: (0, 0))  # VMEM-resident across steps

    out_fm = pl.pallas_call(
        fcnn_kernel,
        out_shape=jax.ShapeDtypeStruct((out_dim, Bp), jnp.float32),
        grid=grid,
        in_specs=[
            pl.BlockSpec((in_dim, tb), lambda i: (0, i)),   # x tile, pipelined over batch
            resident(w1t.shape), resident(b1c.shape),
            resident(w2t.shape), resident(b2c.shape),
            resident(w3t.shape), resident(b3c.shape),
        ],
        out_specs=pl.BlockSpec((out_dim, tb), lambda i: (0, i)),
        compiler_params=pltpu.CompilerParams(
            dimension_semantics=("parallel",),               # megacore-shard batch on v7x
        ),
    )(x_fm, w1t, b1c, w2t, b2c, w3t, b3c)

    return out_fm[:, :B].T  # (B, 2) float32


def init_params(key):
    """Deterministic init mimicking nn.Linear's uniform(-1/sqrt(fan_in), 1/sqrt(fan_in))."""
    dims = [("fc1", 10, 5), ("fc2", 5, 5), ("fc3", 5, 2)]
    params = {}
    for name, fan_in, fan_out in dims:
        key, kw, kb = jax.random.split(key, 3)
        bound = 1.0 / jnp.sqrt(float(fan_in))
        # Stored as [in, out] (transposed relative to PyTorch's [out, in]).
        w = jax.random.uniform(kw, (fan_in, fan_out), jnp.float32, -bound, bound)
        b = jax.random.uniform(kb, (1, fan_out), jnp.float32, -bound, bound)
        params[name] = (w, b)
    return params


def fcnn_reference(x, params):
    """Plain-JAX f32 reference of the PyTorch forward for verification."""
    w1, b1 = params["fc1"]
    w2, b2 = params["fc2"]
    w3, b3 = params["fc3"]
    h = jnp.maximum(x @ w1 + b1, 0.0)
    h = jnp.maximum(h @ w2 + b2, 0.0)
    return h @ w3 + b3


if __name__ == "__main__":
    key = jax.random.PRNGKey(0)
    key, kx = jax.random.split(key)
    params = init_params(key)

    # Small shapes consistent with the module (features = 10).
    batch = 8
    x = jax.random.normal(kx, (batch, 10), jnp.float32)
    out = jax.block_until_ready(fcnn_forward(x, params))
    ref = fcnn_reference(x, params)
    assert out.shape == (batch, 2), out.shape
    # bf16 rounding is applied to x only -> small absolute error vs the f32 reference.
    assert jnp.allclose(out, ref, atol=2e-2, rtol=2e-2), "mismatch vs reference (small batch)"

    # Exercise the multi-tile / padded / pipelined path cheaply (tail tile: 300 % 128 != 0).
    key, kx2 = jax.random.split(key)
    x2 = jax.random.normal(kx2, (300, 10), jnp.float32)
    out2 = jax.block_until_ready(fcnn_forward(x2, params, tile_b=128))
    ref2 = fcnn_reference(x2, params)
    assert out2.shape == (300, 2), out2.shape
    assert jnp.allclose(out2, ref2, atol=2e-2, rtol=2e-2), "mismatch vs reference (tiled batch)"

    print("KERNEL_OK")
</pallas_src>

<mosaic_0001>
module attributes {stable_mosaic.version = 11 : i64} {
  func.func @fcnn_kernel(%arg0: i32, %arg1: memref<10x8xbf16, #tpu.memory_space<vmem>>, %arg2: memref<5x10xf32, #tpu.memory_space<vmem>>, %arg3: memref<5x1xf32, #tpu.memory_space<vmem>>, %arg4: memref<5x5xf32, #tpu.memory_space<vmem>>, %arg5: memref<5x1xf32, #tpu.memory_space<vmem>>, %arg6: memref<2x5xf32, #tpu.memory_space<vmem>>, %arg7: memref<2x1xf32, #tpu.memory_space<vmem>>, %arg8: memref<2x8xf32, #tpu.memory_space<vmem>>) attributes {dimension_semantics = [#tpu.dimension_semantics<parallel>], iteration_bounds = array<i64: 1>, scalar_prefetch = 0 : i64, scratch_operands = 0 : i64, tpu.core_type = #tpu.core_type<tc>, window_params = [{transform_indices = @transform_0, window_bounds = array<i64: 10, 8>}, {pipeline_mode = #tpu.pipeline_mode<synchronous>, transform_indices = @transform_1, window_bounds = array<i64: 5, 10>}, {pipeline_mode = #tpu.pipeline_mode<synchronous>, transform_indices = @transform_2, window_bounds = array<i64: 5, 1>}, {pipeline_mode = #tpu.pipeline_mode<synchronous>, transform_indices = @transform_3, window_bounds = array<i64: 5, 5>}, {pipeline_mode = #tpu.pipeline_mode<synchronous>, transform_indices = @transform_4, window_bounds = array<i64: 5, 1>}, {pipeline_mode = #tpu.pipeline_mode<synchronous>, transform_indices = @transform_5, window_bounds = array<i64: 2, 5>}, {pipeline_mode = #tpu.pipeline_mode<synchronous>, transform_indices = @transform_6, window_bounds = array<i64: 2, 1>}, {transform_indices = @transform_7, window_bounds = array<i64: 2, 8>}]} {
    %c0 = arith.constant 0 : index
    %c0_0 = arith.constant 0 : index
    %0 = vector.load %arg1[%c0, %c0_0] : memref<10x8xbf16, #tpu.memory_space<vmem>>, vector<10x8xbf16>
    %1 = arith.extf %0 : vector<10x8xbf16> to vector<10x8xf32>
    %c0_1 = arith.constant 0 : index
    %c0_2 = arith.constant 0 : index
    %2 = vector.load %arg2[%c0_1, %c0_2] : memref<5x10xf32, #tpu.memory_space<vmem>>, vector<5x10xf32>
    %cst = arith.constant dense<0.000000e+00> : vector<5x8xf32>
    %3 = tpu.matmul %2, %1, %cst {dimension_numbers = #tpu.dot_dimension_numbers<[1], [0], [0], [1], [0, 0, 1, 1], [], []>} : vector<5x10xf32>, vector<10x8xf32>, vector<5x8xf32> -> vector<5x8xf32>
    %c0_3 = arith.constant 0 : index
    %c0_4 = arith.constant 0 : index
    %4 = vector.load %arg3[%c0_3, %c0_4] : memref<5x1xf32, #tpu.memory_space<vmem>>, vector<5x1xf32>
    %5 = vector.broadcast %4 : vector<5x1xf32> to vector<5x8xf32>
    %6 = arith.addf %3, %5 : vector<5x8xf32>
    %cst_5 = arith.constant 0.000000e+00 : f32
    %7 = vector.broadcast %cst_5 : f32 to vector<5x8xf32>
    %8 = arith.maximumf %6, %7 : vector<5x8xf32>
    %c0_6 = arith.constant 0 : index
    %c0_7 = arith.constant 0 : index
    %9 = vector.load %arg4[%c0_6, %c0_7] : memref<5x5xf32, #tpu.memory_space<vmem>>, vector<5x5xf32>
    %cst_8 = arith.constant dense<0.000000e+00> : vector<5x8xf32>
    %10 = tpu.matmul %9, %8, %cst_8 {dimension_numbers = #tpu.dot_dimension_numbers<[1], [0], [0], [1], [0, 0, 1, 1], [], []>} : vector<5x5xf32>, vector<5x8xf32>, vector<5x8xf32> -> vector<5x8xf32>
    %c0_9 = arith.constant 0 : index
    %c0_10 = arith.constant 0 : index
    %11 = vector.load %arg5[%c0_9, %c0_10] : memref<5x1xf32, #tpu.memory_space<vmem>>, vector<5x1xf32>
    %12 = vector.broadcast %11 : vector<5x1xf32> to vector<5x8xf32>
    %13 = arith.addf %10, %12 : vector<5x8xf32>
    %cst_11 = arith.constant 0.000000e+00 : f32
    %14 = vector.broadcast %cst_11 : f32 to vector<5x8xf32>
    %15 = arith.maximumf %13, %14 : vector<5x8xf32>
    %c0_12 = arith.constant 0 : index
    %c0_13 = arith.constant 0 : index
    %16 = vector.load %arg6[%c0_12, %c0_13] : memref<2x5xf32, #tpu.memory_space<vmem>>, vector<2x5xf32>
    %cst_14 = arith.constant dense<0.000000e+00> : vector<2x8xf32>
    %17 = tpu.matmul %16, %15, %cst_14 {dimension_numbers = #tpu.dot_dimension_numbers<[1], [0], [0], [1], [0, 0, 1, 1], [], []>} : vector<2x5xf32>, vector<5x8xf32>, vector<2x8xf32> -> vector<2x8xf32>
    %c0_15 = arith.constant 0 : index
    %c0_16 = arith.constant 0 : index
    %18 = vector.load %arg7[%c0_15, %c0_16] : memref<2x1xf32, #tpu.memory_space<vmem>>, vector<2x1xf32>
    %19 = vector.broadcast %18 : vector<2x1xf32> to vector<2x8xf32>
    %20 = arith.addf %17, %19 : vector<2x8xf32>
    %c0_17 = arith.constant 0 : index
    %c0_18 = arith.constant 0 : index
    %21 = vector.load %arg8[%c0_17, %c0_18] : memref<2x8xf32, #tpu.memory_space<vmem>>, vector<2x8xf32>
    tpu.vector_store %arg8[%c0_17, %c0_18], %20 {strides = array<i32>} : memref<2x8xf32, #tpu.memory_space<vmem>>, vector<2x8xf32>,
    return
  }
  func.func @transform_0(%arg0: i32) -> (i32, i32) {
    %c0_i32 = arith.constant 0 : i32
    %c0_i32_0 = arith.constant 0 : i32
    return %c0_i32, %arg0 : i32, i32
  }
  func.func @transform_1(%arg0: i32) -> (i32, i32) {
    %c0_i32 = arith.constant 0 : i32
    %c0_i32_0 = arith.constant 0 : i32
    %c0_i32_1 = arith.constant 0 : i32
    return %c0_i32, %c0_i32_0 : i32, i32
  }
  func.func @transform_2(%arg0: i32) -> (i32, i32) {
    %c0_i32 = arith.constant 0 : i32
    %c0_i32_0 = arith.constant 0 : i32
    %c0_i32_1 = arith.constant 0 : i32
    return %c0_i32, %c0_i32_0 : i32, i32
  }
  func.func @transform_3(%arg0: i32) -> (i32, i32) {
    %c0_i32 = arith.constant 0 : i32
    %c0_i32_0 = arith.constant 0 : i32
    %c0_i32_1 = arith.constant 0 : i32
    return %c0_i32, %c0_i32_0 : i32, i32
  }
  func.func @transform_4(%arg0: i32) -> (i32, i32) {
    %c0_i32 = arith.constant 0 : i32
    %c0_i32_0 = arith.constant 0 : i32
    %c0_i32_1 = arith.constant 0 : i32
    return %c0_i32, %c0_i32_0 : i32, i32
  }
  func.func @transform_5(%arg0: i32) -> (i32, i32) {
    %c0_i32 = arith.constant 0 : i32
    %c0_i32_0 = arith.constant 0 : i32
    %c0_i32_1 = arith.constant 0 : i32
    return %c0_i32, %c0_i32_0 : i32, i32
  }
  func.func @transform_6(%arg0: i32) -> (i32, i32) {
    %c0_i32 = arith.constant 0 : i32
    %c0_i32_0 = arith.constant 0 : i32
    %c0_i32_1 = arith.constant 0 : i32
    return %c0_i32, %c0_i32_0 : i32, i32
  }
  func.func @transform_7(%arg0: i32) -> (i32, i32) {
    %c0_i32 = arith.constant 0 : i32
    %c0_i32_0 = arith.constant 0 : i32
    return %c0_i32, %arg0 : i32, i32
  }
}

</mosaic_0001>

<llo_original>
// kernel: tpu_custom_call.1
$region0: #{tpu_custom_call.1}
  #allocation0 [shape = 'u32[]', space=smem, size = 0x4, offset = 0x4, fixed_abs, tag = 'smem constant byte address 0x4 - core index']
  #allocation1 [shape = 'u32[144,128]{1,0:T(1,128)}', space=vmem, size = 0x12000, scoped, tag = 'internal scratch']
  %s0 = inlined_call_operand.vmem [shape: bf16[10,8], index: 0, kind: input, shape index: {}]
  %s1 = inlined_call_operand.vmem [shape: f32[5,10], index: 1, kind: input, shape index: {}]
  %s2 = inlined_call_operand.vmem [shape: f32[5,1], index: 2, kind: input, shape index: {}]
  %s3 = inlined_call_operand.vmem [shape: f32[5,5], index: 3, kind: input, shape index: {}]
  %s4 = inlined_call_operand.vmem [shape: f32[5,1], index: 4, kind: input, shape index: {}]
  %s5 = inlined_call_operand.vmem [shape: f32[2,5], index: 5, kind: input, shape index: {}]
  %s6 = inlined_call_operand.vmem [shape: f32[2,1], index: 6, kind: input, shape index: {}]
  %s7 = inlined_call_operand.hbm [shape: f32[2,8], index: 7, kind: output, shape index: {}]
  %s8 = sld [smem:[#allocation0]]
  $region38: #{tpu_custom_call.1} parent=0
    _
  %s10 = ssub.s32 1, %s8
  %s11 = scalar_select 0, %s10, %s8
  $region1: #{tpu_custom_call.1} parent=0
    #allocation2 [shape = 'u8[1024]{0}', space=vmem, size = 0x400, scoped, tag = 'output window, operand 0, single buffered']
    #allocation3 [shape = 's32[1]{0}', space=sflag, size = 0x4, scoped, tag = 'scoped memory for tpu_custom_call.1']
    %12 = vsyncpa [#allocation3], 0
    // Predicated region
    $region2: #{tpu_custom_call.1} parent=1 // pred_check
      _
    $region3: #{tpu_custom_call.1} parent=1 // pred_check_branch
      %14 = sbr.rel (0) target = $region5
    $region4: #{tpu_custom_call.1} parent=1 // pred_region
      _
    $region5: #{tpu_custom_call.1} parent=1 // pred_fallthru
      _
    // Predicated region
    $region6: #{tpu_custom_call.1} parent=1 // pred_check
      _
    $region7: #{tpu_custom_call.1} parent=1 // pred_check_branch
      %16 = sbr.rel (0) target = $region9
    $region8: #{tpu_custom_call.1} parent=1 // pred_region
      _
    $region9: #{tpu_custom_call.1} parent=1 // pred_fallthru
      _
    // Predicated region
    $region10: #{tpu_custom_call.1} parent=1 // pred_check
      _
    $region11: #{tpu_custom_call.1} parent=1 // pred_check_branch
      %18 = sbr.rel (0) target = $region13
    $region12: #{tpu_custom_call.1} parent=1 // pred_region
      _
    $region13: #{tpu_custom_call.1} parent=1 // pred_fallthru
      _
    // Predicated region
    $region14: #{tpu_custom_call.1} parent=1 // pred_check
      _
    $region15: #{tpu_custom_call.1} parent=1 // pred_check_branch
      %20 = sbr.rel (0) target = $region17
    $region16: #{tpu_custom_call.1} parent=1 // pred_region
      _
    $region17: #{tpu_custom_call.1} parent=1 // pred_fallthru
      _
    // Predicated region
    $region18: #{tpu_custom_call.1} parent=1 // pred_check
      _
    $region19: #{tpu_custom_call.1} parent=1 // pred_check_branch
      %22 = sbr.rel (0) target = $region21
    $region20: #{tpu_custom_call.1} parent=1 // pred_region
      _
    $region21: #{tpu_custom_call.1} parent=1 // pred_fallthru
      _
    // Predicated region
    $region22: #{tpu_custom_call.1} parent=1 // pred_check
      _
    $region23: #{tpu_custom_call.1} parent=1 // pred_check_branch
      %24 = sbr.rel (0) target = $region25
    $region24: #{tpu_custom_call.1} parent=1 // pred_region
      _
    $region25: #{tpu_custom_call.1} parent=1 // pred_fallthru
      _
    // Predicated region
    $region26: #{tpu_custom_call.1} parent=1 // pred_check
      _
    $region27: #{tpu_custom_call.1} parent=1 // pred_check_branch
      %26 = sbr.rel (0) target = $region29
    $region28: #{tpu_custom_call.1} parent=1 // pred_region
      _
    $region29: #{tpu_custom_call.1} parent=1 // pred_fallthru
      _
    %v27 = vld [vmem:[%s0] sm:$0xf]
    %v28 = vld [vmem:[%s0 + $0x4] sm:$0x1]
    %v29 = vunpack.c.l.bf16 %v27
    %v30 = vunpack.c.l.bf16 %v28
    %v31 = vld [vmem:[%s1] sm:$0x1f]
    %v32 = vld [vmem:[%s2] sm:$0x1f]
    %34 = vset.pattern.permute.xlu0 0
    %35 = vperm.xlu0 %34, %v32
    %v36 = vpop.permute.xlu0 %35
    %vm38 = vcmask 80896
    %v40 = vsel %vm38, %v31, 0
    %vm42 = vcmask 1041408
    %v44 = vsel %vm42, %v30, 0
    %46 = vmatprep.subr.mxu0 0.0
    %47 = vmatpush1.msra.mxu0 0.0
    %48 = vmatprep.subr.mxu0 0.0
    %49 = vmatpush1.msra.mxu0 0.0
    %50 = vmatprep.subr.mxu0 0.0
    %51 = vmatpush1.msra.mxu0 0.0
    %52 = vmatprep.subr.mxu0 0.0
    %53 = vmatpush1.msra.mxu0 0.0
    %54 = vmatprep.subr.mxu0 0.0
    %55 = vmatpush1.msra.mxu0 0.0
    %56 = vmatprep.subr.mxu0 0.0
    %57 = vmatpush1.msra.mxu0 0.0
    %58 = vmatprep.subr.mxu0 0.0
    %59 = vmatpush1.msra.mxu0 0.0
    %60 = vmatprep.subr.mxu0 0.0
    %61 = vmatpush1.msra.mxu0 0.0
    %62 = vmatprep.subr.mxu0 0.0
    %63 = vmatpush1.msra.mxu0 0.0
    %64 = vmatprep.subr.mxu0 0.0
    %65 = vmatpush1.msra.mxu0 0.0
    %66 = vmatprep.subr.mxu0 0.0
    %67 = vmatpush1.msra.mxu0 0.0
    %68 = vmatprep.subr.mxu0 0.0
    %69 = vmatpush1.msra.mxu0 0.0
    %70 = vmatprep.subr.mxu0 0.0
    %71 = vmatpush1.msra.mxu0 0.0
    %72 = vmatprep.subr.mxu0 0.0
    %73 = vmatpush1.msra.mxu0 0.0
    %74 = vmatprep.subr.mxu0 0.0
    %75 = vmatpush1.msra.mxu0 %v44
    %76 = vmatprep.subr.mxu0 0.0
    %77 = vmatpush1.msra.mxu0 %v29
    %78 = vmatprep.subr.mxu0 0.0
    %79 = vmatpush2.msra.mxu0 0.0
    %80 = vmatprep.subr.mxu0 0.0
    %81 = vmatpush2.msra.mxu0 0.0
    %82 = vmatprep.subr.mxu0 0.0
    %83 = vmatpush2.msra.mxu0 0.0
    %84 = vmatprep.subr.mxu0 0.0
    %85 = vmatpush2.msra.mxu0 0.0
    %86 = vmatprep.subr.mxu0 0.0
    %87 = vmatpush2.msra.mxu0 0.0
    %88 = vmatprep.subr.mxu0 0.0
    %89 = vmatpush2.msra.mxu0 0.0
    %90 = vmatprep.subr.mxu0 0.0
    %91 = vmatpush2.msra.mxu0 0.0
    %92 = vmatprep.subr.mxu0 0.0
    %93 = vmatpush2.msra.mxu0 0.0
    %94 = vmatprep.subr.mxu0 0.0
    %95 = vmatpush2.msra.mxu0 0.0
    %96 = vmatprep.subr.mxu0 0.0
    %97 = vmatpush2.msra.mxu0 0.0
    %98 = vmatprep.subr.mxu0 0.0
    %99 = vmatpush2.msra.mxu0 0.0
    %100 = vmatprep.subr.mxu0 0.0
    %101 = vmatpush2.msra.mxu0 0.0
    %102 = vmatprep.subr.mxu0 0.0
    %103 = vmatpush2.msra.mxu0 0.0
    %104 = vmatprep.subr.mxu0 0.0
    %105 = vmatpush2.msra.mxu0 0.0
    %106 = vmatprep.subr.mxu0 0.0
    %107 = vmatpush2.msra.mxu0 0.0
    %108 = vmatprep.subr.mxu0 0.0
    %109 = vmatpush2.msra.mxu0 0.0
    %110 = vmatprep.mubr.f32.mxu0 0.0
    %111 = vmatmul.mubr.f32.gmra.mxu0 %v40
    %v112 = vpop.f32.mrf.mxu0
    %v113 = vadd.f32 %v36, %v112
    %v114 = vpop.f32.mrf.mxu0
    %115 = vdwg.mxu0
    %v116 = vmax.f32 %v113, 0.0
    %v117 = vld [vmem:[%s3] sm:$0x1f]
    %v118 = vld [vmem:[%s4] sm:$0x1f]
    %120 = vset.pattern.permute.xlu0 0
    %121 = vperm.xlu0 %120, %v118
    %v122 = vpop.permute.xlu0 %121
    %vm124 = vcmask 39936
    %v126 = vsel %vm124, %v117, 0
    %vm128 = vcmask 1044480
    %v130 = vsel %vm128, %v116, 0
    %132 = vmatprep.subr.mxu0 0.0
    %133 = vmatpush1.msra.mxu0 0.0
    %134 = vmatprep.subr.mxu0 0.0
    %135 = vmatpush1.msra.mxu0 0.0
    %136 = vmatprep.subr.mxu0 0.0
    %137 = vmatpush1.msra.mxu0 0.0
    %138 = vmatprep.subr.mxu0 0.0
    %139 = vmatpush1.msra.mxu0 0.0
    %140 = vmatprep.subr.mxu0 0.0
    %141 = vmatpush1.msra.mxu0 0.0
    %142 = vmatprep.subr.mxu0 0.0
    %143 = vmatpush1.msra.mxu0 0.0
    %144 = vmatprep.subr.mxu0 0.0
    %145 = vmatpush1.msra.mxu0 0.0
    %146 = vmatprep.subr.mxu0 0.0
    %147 = vmatpush1.msra.mxu0 0.0
    %148 = vmatprep.subr.mxu0 0.0
    %149 = vmatpush1.msra.mxu0 0.0
    %150 = vmatprep.subr.mxu0 0.0
    %151 = vmatpush1.msra.mxu0 0.0
    %152 = vmatprep.subr.mxu0 0.0
    %153 = vmatpush1.msra.mxu0 0.0
    %154 = vmatprep.subr.mxu0 0.0
    %155 = vmatpush1.msra.mxu0 0.0
    %156 = vmatprep.subr.mxu0 0.0
    %157 = vmatpush1.msra.mxu0 0.0
    %158 = vmatprep.subr.mxu0 0.0
    %159 = vmatpush1.msra.mxu0 0.0
    %160 = vmatprep.subr.mxu0 0.0
    %161 = vmatpush1.msra.mxu0 0.0
    %162 = vmatprep.subr.mxu0 0.0
    %163 = vmatpush1.msra.mxu0 %v130
    %164 = vmatprep.subr.mxu0 0.0
    %165 = vmatpush2.msra.mxu0 0.0
    %166 = vmatprep.subr.mxu0 0.0
    %167 = vmatpush2.msra.mxu0 0.0
    %168 = vmatprep.subr.mxu0 0.0
    %169 = vmatpush2.msra.mxu0 0.0
    %170 = vmatprep.subr.mxu0 0.0
    %171 = vmatpush2.msra.mxu0 0.0
    %172 = vmatprep.subr.mxu0 0.0
    %173 = vmatpush2.msra.mxu0 0.0
    %174 = vmatprep.subr.mxu0 0.0
    %175 = vmatpush2.msra.mxu0 0.0
    %176 = vmatprep.subr.mxu0 0.0
    %177 = vmatpush2.msra.mxu0 0.0
    %178 = vmatprep.subr.mxu0 0.0
    %179 = vmatpush2.msra.mxu0 0.0
    %180 = vmatprep.subr.mxu0 0.0
    %181 = vmatpush2.msra.mxu0 0.0
    %182 = vmatprep.subr.mxu0 0.0
    %183 = vmatpush2.msra.mxu0 0.0
    %184 = vmatprep.subr.mxu0 0.0
    %185 = vmatpush2.msra.mxu0 0.0
    %186 = vmatprep.subr.mxu0 0.0
    %187 = vmatpush2.msra.mxu0 0.0
    %188 = vmatprep.subr.mxu0 0.0
    %189 = vmatpush2.msra.mxu0 0.0
    %190 = vmatprep.subr.mxu0 0.0
    %191 = vmatpush2.msra.mxu0 0.0
    %192 = vmatprep.subr.mxu0 0.0
    %193 = vmatpush2.msra.mxu0 0.0
    %194 = vmatprep.subr.mxu0 0.0
    %195 = vmatpush2.msra.mxu0 0.0
    %196 = vmatprep.mubr.f32.mxu0 0.0
    %197 = vmatmul.mubr.f32.gmra.mxu0 %v126
    %v198 = vpop.f32.mrf.mxu0
    %v199 = vadd.f32 %v122, %v198
    %v200 = vpop.f32.mrf.mxu0
    %201 = vdwg.mxu0
    %v202 = vmax.f32 %v199, 0.0
    %v203 = vld [vmem:[%s5] sm:$0x3]
    %v204 = vld [vmem:[%s6] sm:$0x3]
    %206 = vset.pattern.permute.xlu0 0
    %207 = vperm.xlu0 %206, %v204
    %v208 = vpop.permute.xlu0 %207
    %v211 = vsel %vm124, %v203, 0
    %v214 = vsel %vm128, %v202, 0
    %216 = vmatprep.subr.mxu0 0.0
    %217 = vmatpush1.msra.mxu0 0.0
    %218 = vmatprep.subr.mxu0 0.0
    %219 = vmatpush1.msra.mxu0 0.0
    %220 = vmatprep.subr.mxu0 0.0
    %221 = vmatpush1.msra.mxu0 0.0
    %222 = vmatprep.subr.mxu0 0.0
    %223 = vmatpush1.msra.mxu0 0.0
    %224 = vmatprep.subr.mxu0 0.0
    %225 = vmatpush1.msra.mxu0 0.0
    %226 = vmatprep.subr.mxu0 0.0
    %227 = vmatpush1.msra.mxu0 0.0
    %228 = vmatprep.subr.mxu0 0.0
    %229 = vmatpush1.msra.mxu0 0.0
    %230 = vmatprep.subr.mxu0 0.0
    %231 = vmatpush1.msra.mxu0 0.0
    %232 = vmatprep.subr.mxu0 0.0
    %233 = vmatpush1.msra.mxu0 0.0
    %234 = vmatprep.subr.mxu0 0.0
    %235 = vmatpush1.msra.mxu0 0.0
    %236 = vmatprep.subr.mxu0 0.0
    %237 = vmatpush1.msra.mxu0 0.0
    %238 = vmatprep.subr.mxu0 0.0
    %239 = vmatpush1.msra.mxu0 0.0
    %240 = vmatprep.subr.mxu0 0.0
    %241 = vmatpush1.msra.mxu0 0.0
    %242 = vmatprep.subr.mxu0 0.0
    %243 = vmatpush1.msra.mxu0 0.0
    %244 = vmatprep.subr.mxu0 0.0
    %245 = vmatpush1.msra.mxu0 0.0
    %246 = vmatprep.subr.mxu0 0.0
    %247 = vmatpush1.msra.mxu0 %v214
    %248 = vmatprep.subr.mxu0 0.0
    %249 = vmatpush2.msra.mxu0 0.0
    %250 = vmatprep.subr.mxu0 0.0
    %251 = vmatpush2.msra.mxu0 0.0
    %252 = vmatprep.subr.mxu0 0.0
    %253 = vmatpush2.msra.mxu0 0.0
    %254 = vmatprep.subr.mxu0 0.0
    %255 = vmatpush2.msra.mxu0 0.0
    %256 = vmatprep.subr.mxu0 0.0
    %257 = vmatpush2.msra.mxu0 0.0
    %258 = vmatprep.subr.mxu0 0.0
    %259 = vmatpush2.msra.mxu0 0.0
    %260 = vmatprep.subr.mxu0 0.0
    %261 = vmatpush2.msra.mxu0 0.0
    %262 = vmatprep.subr.mxu0 0.0
    %263 = vmatpush2.msra.mxu0 0.0
    %264 = vmatprep.subr.mxu0 0.0
    %265 = vmatpush2.msra.mxu0 0.0
    %266 = vmatprep.subr.mxu0 0.0
    %267 = vmatpush2.msra.mxu0 0.0
    %268 = vmatprep.subr.mxu0 0.0
    %269 = vmatpush2.msra.mxu0 0.0
    %270 = vmatprep.subr.mxu0 0.0
    %271 = vmatpush2.msra.mxu0 0.0
    %272 = vmatprep.subr.mxu0 0.0
    %273 = vmatpush2.msra.mxu0 0.0
    %274 = vmatprep.subr.mxu0 0.0
    %275 = vmatpush2.msra.mxu0 0.0
    %276 = vmatprep.subr.mxu0 0.0
    %277 = vmatpush2.msra.mxu0 0.0
    %278 = vmatprep.subr.mxu0 0.0
    %279 = vmatpush2.msra.mxu0 0.0
    %280 = vmatprep.mubr.f32.mxu0 0.0
    %281 = vmatmul.mubr.f32.gmra.mxu0 %v211
    %v282 = vpop.f32.mrf.mxu0
    %v283 = vadd.f32 %v208, %v282
    %v284 = vpop.f32.mrf.mxu0
    %285 = vdwg.mxu0
    %vm286 = vcmask 58368
    %287 = vst.msk [vmem:[#allocation2] sm:$0x3] %vm286, %v283
    // Predicated region
    $region30: #{tpu_custom_call.1} parent=1 // pred_check
      _
    $region31: #{tpu_custom_call.1} parent=1 // pred_check_branch
      %289 = sbr.rel (0) target = $region33
    $region32: #{tpu_custom_call.1} parent=1 // pred_region
      %s291 = ssub.s32 32, 32
      %292 = vsyncadd [#allocation3], %s291
      %s294 = sshll.u32 [#allocation2], 4
      %s295 = int_to_ptr.vmem [resolvable:$true] %s294
      %297 = dma.vmem_to_hbm [thread:$0]  %s295, 32, %s7, [#allocation3]
    $region33: #{tpu_custom_call.1} parent=1 // pred_fallthru
      _
    // Predicated region
    $region34: #{tpu_custom_call.1} parent=1 // pred_check
      _
    $region35: #{tpu_custom_call.1} parent=1 // pred_check_branch
      %299 = sbr.rel (0) target = $region37
    $region36: #{tpu_custom_call.1} parent=1 // pred_region
      %300 = dma.done [#allocation3], 32
    $region37: #{tpu_custom_call.1} parent=1 // pred_fallthru
      _
    %301 = vsyncpa [#allocation3], 1

</llo_original>
